<compile_context>
chip_gen: v6e
topology: v6e:2x2x1
jax: 0.10.0
libtpu: 0.0.40
codegen_flags: <defaults>
</compile_context>

<pallas_src>
import functools

import numpy as np
import jax
import jax.numpy as jnp
from jax.experimental import pallas as pl
from jax.experimental.pallas import tpu as pltpu


# ---------------------------------------------------------------------------
# fused kernel
# ---------------------------------------------------------------------------
def _bn_relu(y, gamma, beta, eps):
    # BatchNorm1d in training mode: biased batch statistics over the N axis.
    mean = jnp.mean(y, axis=0, keepdims=True)
    cen = y - mean
    var = jnp.mean(cen * cen, axis=0, keepdims=True)
    y = cen * jax.lax.rsqrt(var + eps) * gamma + beta
    return jnp.maximum(y, 0.0)


def _seg_lay_kernel(*refs, k, p, bn_relu_flags, eps):
    # refs = (to_coords, from_coords, from_features, to_features,
    #         w0_to, w0_km, b0, gamma0, beta0,
    #         [w_t, b, gamma, beta]  for each remaining FP layer,
    #         out)
    to_c_ref, from_c_ref, from_f_ref, to_f_ref = refs[:4]
    out_ref = refs[-1]
    prm = refs[4:-1]

    to_c = to_c_ref[...].astype(jnp.float32)      # (N, D)
    from_c = from_c_ref[...].astype(jnp.float32)  # (Np, D)
    N = to_c.shape[0]
    Np = from_c.shape[0]
    D = from_c.shape[1]
    inf = jnp.float32(jnp.inf)

    # ---- pairwise squared distances on the MXU ----------------------------
    # d2 = ||t||^2 - 2 t.f + ||f||^2 ; the coordinate contraction runs on the
    # MXU, keeping the VPU free for the selection compares/selects.
    tf = jnp.einsum("nd,md->nm", to_c, from_c,
                    preferred_element_type=jnp.float32)              # (N, Np)
    f2 = jnp.einsum("od,md->om", jnp.ones((1, D), jnp.float32),
                    from_c * from_c,
                    preferred_element_type=jnp.float32)              # (1, Np)
    t2 = jnp.sum(to_c * to_c, axis=1, keepdims=True)                 # (N, 1)
    d2 = jnp.maximum(t2 - 2.0 * tf + f2, 0.0)                        # (N, Np)

    # ---- iterative k-nearest selection: 1 cross-lane reduce per step ------
    W = jnp.zeros((N, Np), jnp.float32)
    wsum = jnp.zeros((N, 1), jnp.float32)
    d2w = d2
    for _ in range(k):                                 # k tiny -> static unroll
        m = jnp.min(d2w, axis=-1, keepdims=True)       # (N, 1)
        onehot = d2w == m                              # (N, Np)
        m_safe = jnp.where(m > 0.0, m, 1.0)
        if p == 2.0:
            w_fin = 1.0 / m_safe                       # exact; no sqrt/pow
        else:
            w_fin = jnp.power(m_safe, jnp.float32(-0.5 * p))
        w = jnp.where(m > 0.0, w_fin, inf)             # distance 0 -> inf
        W = jnp.where(onehot, w, W)
        wsum = wsum + w
        d2w = jnp.where(onehot, inf, d2w)

    # exact division keeps the torch inf/inf -> NaN -> 1.0 path intact
    Wn = W / wsum
    Wn = jnp.where(jnp.isnan(Wn), jnp.float32(1.0), Wn)

    km = jnp.dot(Wn, from_f_ref[...].astype(jnp.float32),
                 preferred_element_type=jnp.float32)                 # (N, Cf)

    # ---- FP MLP; torch.cat absorbed by the split first-layer weight -------
    to_f = to_f_ref[...].astype(jnp.float32)
    w0_to, w0_km, b0, g0, be0 = (prm[0][...], prm[1][...], prm[2][...],
                                 prm[3][...], prm[4][...])
    y = (jnp.dot(to_f, w0_to, preferred_element_type=jnp.float32)
         + jnp.dot(km, w0_km, preferred_element_type=jnp.float32) + b0)
    if bn_relu_flags[0]:
        y = _bn_relu(y, g0, be0, eps)

    r = 5
    for li in range(1, len(bn_relu_flags)):
        w_t, b, g, be = (prm[r][...], prm[r + 1][...],
                         prm[r + 2][...], prm[r + 3][...])
        y = jnp.dot(y, w_t, preferred_element_type=jnp.float32) + b
        if bn_relu_flags[li]:
            y = _bn_relu(y, g, be, eps)
        r += 4

    out_ref[...] = y.astype(out_ref.dtype)


# ---------------------------------------------------------------------------
# wrapper: single pallas_call for the whole Seg_lay forward
# ---------------------------------------------------------------------------
@functools.partial(jax.jit, static_argnames=("bn_flags", "k", "p"))
def seg_lay_forward(from_coords, from_features, to_coords, to_features,
                    layers, *, bn_flags, k, p):
    """Returns the new to_points.features."""
    Np = from_coords.shape[0]
    k = min(int(k), Np)
    N = to_coords.shape[0]
    C_to = to_features.shape[1]

    # split the first layer weight so the kernel never materializes
    # cat(to_features, km):  x @ W = to_f @ W[:C_to] + km @ W[C_to:]
    w0 = layers[0]["w_t"]
    args = [to_coords, from_coords, from_features, to_features,
            w0[:C_to], w0[C_to:],
            layers[0]["b"], layers[0]["gamma"], layers[0]["beta"]]
    for layer in layers[1:]:
        args += [layer["w_t"], layer["b"], layer["gamma"], layer["beta"]]

    out_dim = layers[-1]["w_t"].shape[1]
    kern = functools.partial(_seg_lay_kernel, k=k, p=float(p),
                             bn_relu_flags=tuple(bn_flags), eps=1e-5)

    # TODO(synk): at realistic point counts (N, Np in the thousands) the (N,Np)
    # d2/W matrices force an N-tiled grid (block_N ~256-1024, "parallel"
    # dimension_semantics to light up v7x's second TensorCore, block sized for
    # v7x's 64 MiB VMEM) and BN batch stats become cross-tile reductions; at
    # the current sizes a single VMEM block is strictly faster.
    return pl.pallas_call(
        kern,
        out_shape=jax.ShapeDtypeStruct((N, out_dim), jnp.float32),
        in_specs=[pl.BlockSpec(memory_space=pltpu.MemorySpace.VMEM)] * len(args),
        out_specs=pl.BlockSpec(memory_space=pltpu.MemorySpace.VMEM),
    )(*args)


# ---------------------------------------------------------------------------
# parameter init (deterministic, fresh-module style)
# ---------------------------------------------------------------------------
def init_fp_params(key, inp_dim, fp_config, last):
    layers, flags = [], []
    n_layer = len(fp_config)
    d = inp_dim
    for i, out_dim in enumerate(fp_config):
        key, kw, kb = jax.random.split(key, 3)
        w = jax.random.normal(kw, (out_dim, d), jnp.float32) * (1.0 / np.sqrt(d))
        b = jax.random.normal(kb, (1, out_dim), jnp.float32) * 0.01
        layers.append(dict(
            w_t=w.T, b=b,
            gamma=jnp.ones((1, out_dim), jnp.float32),   # torch BN init: weight=1
            beta=jnp.zeros((1, out_dim), jnp.float32)))  # torch BN init: bias=0
        flags.append(not (last and i == n_layer - 1))
        d = out_dim
    # TODO(synk): torch appends Dropout(0.5) when last=False; stochastic
    # training-mode dropout is not implemented here (last=True; identity in eval).
    return layers, tuple(flags)


# ---------------------------------------------------------------------------
# pure-JAX reference (mirrors the torch code)
# ---------------------------------------------------------------------------
def _kmeans_ref(k, p, from_coords, from_features, to_coords):
    Np = from_coords.shape[0]
    k = min(k, Np)
    d = jnp.linalg.norm(from_coords[None, :, :] - to_coords[:, None, :], axis=2)
    sorted_d = jnp.sort(d, axis=1)
    indices = jnp.argsort(d, axis=1)
    w_raw = jnp.power(sorted_d[:, :k], -float(p))
    w_sum = jnp.sum(w_raw, axis=1, keepdims=True)
    w = w_raw / w_sum
    w = jnp.where(jnp.isnan(w), 1.0, w)
    res = jnp.zeros((to_coords.shape[0], from_features.shape[1]), jnp.float32)
    for i in range(k):
        res = res + w[:, i:i + 1] * from_features[indices[:, i]]
    return res


def _fp_ref(x, layers, bn_flags, eps=1e-5):
    for layer, f in zip(layers, bn_flags):
        y = x @ layer["w_t"] + layer["b"]
        if f:
            mean = jnp.mean(y, axis=0, keepdims=True)
            var = jnp.mean((y - mean) ** 2, axis=0, keepdims=True)
            y = (y - mean) / jnp.sqrt(var + eps) * layer["gamma"] + layer["beta"]
            y = jnp.maximum(y, 0.0)
        x = y
    return x


if __name__ == "__main__":
    key = jax.random.PRNGKey(0)

    # small shapes consistent with the module
    k_nn, p_exp = 4, 2
    Np, N, D = 32, 16, 3
    C_from, C_to = 8, 8
    fp_config = [32, 16]
    last = True
    inp_dim = C_to + C_from   # cat(to_features, kmeans(from_features))

    key, k1, k2, k3, k4, kp = jax.random.split(key, 6)
    from_coords = jax.random.uniform(k1, (Np, D), jnp.float32)
    from_features = jax.random.normal(k2, (Np, C_from), jnp.float32)
    to_coords = jax.random.uniform(k3, (N, D), jnp.float32)
    to_features = jax.random.normal(k4, (N, C_to), jnp.float32)

    layers, bn_flags = init_fp_params(kp, inp_dim, fp_config, last)

    out = seg_lay_forward(from_coords, from_features, to_coords, to_features,
                          layers, bn_flags=bn_flags, k=k_nn, p=float(p_exp))
    out = jax.block_until_ready(out)

    # correctness check against the pure-JAX (torch-faithful) reference
    km_ref = _kmeans_ref(k_nn, p_exp, from_coords, from_features, to_coords)
    ref = _fp_ref(jnp.concatenate([to_features, km_ref], axis=1), layers, bn_flags)
    np.testing.assert_allclose(np.asarray(out), np.asarray(ref),
                               atol=1e-3, rtol=1e-3)

    print("KERNEL_OK")
</pallas_src>

<mosaic_0001>
module attributes {stable_mosaic.version = 11 : i64} {
  func.func @_seg_lay_kernel(%arg0: memref<16x3xf32, #tpu.memory_space<vmem>>, %arg1: memref<32x3xf32, #tpu.memory_space<vmem>>, %arg2: memref<32x8xf32, #tpu.memory_space<vmem>>, %arg3: memref<16x8xf32, #tpu.memory_space<vmem>>, %arg4: memref<8x32xf32, #tpu.memory_space<vmem>>, %arg5: memref<8x32xf32, #tpu.memory_space<vmem>>, %arg6: memref<1x32xf32, #tpu.memory_space<vmem>>, %arg7: memref<1x32xf32, #tpu.memory_space<vmem>>, %arg8: memref<1x32xf32, #tpu.memory_space<vmem>>, %arg9: memref<32x16xf32, #tpu.memory_space<vmem>>, %arg10: memref<1x16xf32, #tpu.memory_space<vmem>>, %arg11: memref<1x16xf32, #tpu.memory_space<vmem>>, %arg12: memref<1x16xf32, #tpu.memory_space<vmem>>, %arg13: memref<16x16xf32, #tpu.memory_space<vmem>>) attributes {dimension_semantics = [], scalar_prefetch = 0 : i64, scratch_operands = 0 : i64, tpu.core_type = #tpu.core_type<tc>} {
    %c0 = arith.constant 0 : index
    %c0_0 = arith.constant 0 : index
    %0 = vector.load %arg0[%c0, %c0_0] : memref<16x3xf32, #tpu.memory_space<vmem>>, vector<16x3xf32>
    %c0_1 = arith.constant 0 : index
    %c0_2 = arith.constant 0 : index
    %1 = vector.load %arg1[%c0_1, %c0_2] : memref<32x3xf32, #tpu.memory_space<vmem>>, vector<32x3xf32>
    "tpu.trace_start"() <{level = 10 : i32, message = "nd,md->nm"}> : () -> ()
    %cst = arith.constant dense<0.000000e+00> : vector<16x32xf32>
    %2 = tpu.matmul %0, %1, %cst {dimension_numbers = #tpu.dot_dimension_numbers<[1], [1], [0], [0], [0, 0, 1, 0], [], []>} : vector<16x3xf32>, vector<32x3xf32>, vector<16x32xf32> -> vector<16x32xf32>
    %cst_3 = arith.constant 1.000000e+00 : f32
    "tpu.trace_stop"() : () -> ()
    %3 = vector.broadcast %cst_3 : f32 to vector<1x3xf32>
    %4 = arith.mulf %1, %1 : vector<32x3xf32>
    "tpu.trace_start"() <{level = 10 : i32, message = "od,md->om"}> : () -> ()
    %cst_4 = arith.constant dense<0.000000e+00> : vector<1x32xf32>
    %5 = tpu.matmul %3, %4, %cst_4 {dimension_numbers = #tpu.dot_dimension_numbers<[1], [1], [0], [0], [0, 0, 1, 0], [], []>} : vector<1x3xf32>, vector<32x3xf32>, vector<1x32xf32> -> vector<1x32xf32>
    "tpu.trace_stop"() : () -> ()
    %6 = arith.mulf %0, %0 : vector<16x3xf32>
    %cst_5 = arith.constant dense<0.000000e+00> : vector<16xf32>
    %7 = vector.multi_reduction <add>, %6, %cst_5 [1] : vector<16x3xf32> to vector<16xf32>
    %8 = vector.shape_cast %7 : vector<16xf32> to vector<16x1xf32>
    %cst_6 = arith.constant 2.000000e+00 : f32
    %9 = vector.broadcast %cst_6 : f32 to vector<16x32xf32>
    %10 = arith.mulf %9, %2 : vector<16x32xf32>
    %11 = vector.broadcast %8 : vector<16x1xf32> to vector<16x32xf32>
    %12 = arith.subf %11, %10 : vector<16x32xf32>
    %13 = vector.broadcast %5 : vector<1x32xf32> to vector<16x32xf32>
    %14 = arith.addf %12, %13 : vector<16x32xf32>
    %cst_7 = arith.constant 0.000000e+00 : f32
    %15 = vector.broadcast %cst_7 : f32 to vector<16x32xf32>
    %16 = arith.maximumf %14, %15 : vector<16x32xf32>
    %cst_8 = arith.constant 0.000000e+00 : f32
    %17 = vector.broadcast %cst_8 : f32 to vector<16x32xf32>
    %cst_9 = arith.constant 0.000000e+00 : f32
    %18 = vector.broadcast %cst_9 : f32 to vector<16x1xf32>
    %cst_10 = arith.constant dense<0x7F800000> : vector<16xf32>
    %19 = vector.multi_reduction <minimumf>, %16, %cst_10 [1] : vector<16x32xf32> to vector<16xf32>
    %20 = vector.shape_cast %19 : vector<16xf32> to vector<16x1xf32>
    %21 = vector.broadcast %20 : vector<16x1xf32> to vector<16x32xf32>
    %22 = arith.cmpf oeq, %16, %21 : vector<16x32xf32>
    %cst_11 = arith.constant 0.000000e+00 : f32
    %23 = vector.broadcast %cst_11 : f32 to vector<16x1xf32>
    %24 = arith.cmpf ogt, %20, %23 : vector<16x1xf32>
    %cst_12 = arith.constant 1.000000e+00 : f32
    %25 = vector.broadcast %cst_12 : f32 to vector<16x1xf32>
    %26 = arith.select %24, %20, %25 : vector<16x1xi1>, vector<16x1xf32>
    %cst_13 = arith.constant 1.000000e+00 : f32
    %27 = vector.broadcast %cst_13 : f32 to vector<16x1xf32>
    %28 = arith.divf %27, %26 : vector<16x1xf32>
    %cst_14 = arith.constant 0.000000e+00 : f32
    %29 = vector.broadcast %cst_14 : f32 to vector<16x1xf32>
    %30 = arith.cmpf ogt, %20, %29 : vector<16x1xf32>
    %cst_15 = arith.constant 0x7F800000 : f32
    %31 = vector.broadcast %cst_15 : f32 to vector<16x1xf32>
    %32 = arith.select %30, %28, %31 : vector<16x1xi1>, vector<16x1xf32>
    %33 = vector.shape_cast %32 : vector<16x1xf32> to vector<16x1xf32>
    %34 = vector.broadcast %33 : vector<16x1xf32> to vector<16x32xf32>
    %35 = arith.select %22, %34, %17 : vector<16x32xi1>, vector<16x32xf32>
    %36 = arith.addf %18, %32 : vector<16x1xf32>
    %cst_16 = arith.constant 0x7F800000 : f32
    %37 = vector.broadcast %cst_16 : f32 to vector<16x32xf32>
    %38 = arith.select %22, %37, %16 : vector<16x32xi1>, vector<16x32xf32>
    %cst_17 = arith.constant dense<0x7F800000> : vector<16xf32>
    %39 = vector.multi_reduction <minimumf>, %38, %cst_17 [1] : vector<16x32xf32> to vector<16xf32>
    %40 = vector.shape_cast %39 : vector<16xf32> to vector<16x1xf32>
    %41 = vector.broadcast %40 : vector<16x1xf32> to vector<16x32xf32>
    %42 = arith.cmpf oeq, %38, %41 : vector<16x32xf32>
    %cst_18 = arith.constant 0.000000e+00 : f32
    %43 = vector.broadcast %cst_18 : f32 to vector<16x1xf32>
    %44 = arith.cmpf ogt, %40, %43 : vector<16x1xf32>
    %cst_19 = arith.constant 1.000000e+00 : f32
    %45 = vector.broadcast %cst_19 : f32 to vector<16x1xf32>
    %46 = arith.select %44, %40, %45 : vector<16x1xi1>, vector<16x1xf32>
    %cst_20 = arith.constant 1.000000e+00 : f32
    %47 = vector.broadcast %cst_20 : f32 to vector<16x1xf32>
    %48 = arith.divf %47, %46 : vector<16x1xf32>
    %cst_21 = arith.constant 0.000000e+00 : f32
    %49 = vector.broadcast %cst_21 : f32 to vector<16x1xf32>
    %50 = arith.cmpf ogt, %40, %49 : vector<16x1xf32>
    %cst_22 = arith.constant 0x7F800000 : f32
    %51 = vector.broadcast %cst_22 : f32 to vector<16x1xf32>
    %52 = arith.select %50, %48, %51 : vector<16x1xi1>, vector<16x1xf32>
    %53 = vector.shape_cast %52 : vector<16x1xf32> to vector<16x1xf32>
    %54 = vector.broadcast %53 : vector<16x1xf32> to vector<16x32xf32>
    %55 = arith.select %42, %54, %35 : vector<16x32xi1>, vector<16x32xf32>
    %56 = arith.addf %36, %52 : vector<16x1xf32>
    %cst_23 = arith.constant 0x7F800000 : f32
    %57 = vector.broadcast %cst_23 : f32 to vector<16x32xf32>
    %58 = arith.select %42, %57, %38 : vector<16x32xi1>, vector<16x32xf32>
    %cst_24 = arith.constant dense<0x7F800000> : vector<16xf32>
    %59 = vector.multi_reduction <minimumf>, %58, %cst_24 [1] : vector<16x32xf32> to vector<16xf32>
    %60 = vector.shape_cast %59 : vector<16xf32> to vector<16x1xf32>
    %61 = vector.broadcast %60 : vector<16x1xf32> to vector<16x32xf32>
    %62 = arith.cmpf oeq, %58, %61 : vector<16x32xf32>
    %cst_25 = arith.constant 0.000000e+00 : f32
    %63 = vector.broadcast %cst_25 : f32 to vector<16x1xf32>
    %64 = arith.cmpf ogt, %60, %63 : vector<16x1xf32>
    %cst_26 = arith.constant 1.000000e+00 : f32
    %65 = vector.broadcast %cst_26 : f32 to vector<16x1xf32>
    %66 = arith.select %64, %60, %65 : vector<16x1xi1>, vector<16x1xf32>
    %cst_27 = arith.constant 1.000000e+00 : f32
    %67 = vector.broadcast %cst_27 : f32 to vector<16x1xf32>
    %68 = arith.divf %67, %66 : vector<16x1xf32>
    %cst_28 = arith.constant 0.000000e+00 : f32
    %69 = vector.broadcast %cst_28 : f32 to vector<16x1xf32>
    %70 = arith.cmpf ogt, %60, %69 : vector<16x1xf32>
    %cst_29 = arith.constant 0x7F800000 : f32
    %71 = vector.broadcast %cst_29 : f32 to vector<16x1xf32>
    %72 = arith.select %70, %68, %71 : vector<16x1xi1>, vector<16x1xf32>
    %73 = vector.shape_cast %72 : vector<16x1xf32> to vector<16x1xf32>
    %74 = vector.broadcast %73 : vector<16x1xf32> to vector<16x32xf32>
    %75 = arith.select %62, %74, %55 : vector<16x32xi1>, vector<16x32xf32>
    %76 = arith.addf %56, %72 : vector<16x1xf32>
    %cst_30 = arith.constant 0x7F800000 : f32
    %77 = vector.broadcast %cst_30 : f32 to vector<16x32xf32>
    %78 = arith.select %62, %77, %58 : vector<16x32xi1>, vector<16x32xf32>
    %cst_31 = arith.constant dense<0x7F800000> : vector<16xf32>
    %79 = vector.multi_reduction <minimumf>, %78, %cst_31 [1] : vector<16x32xf32> to vector<16xf32>
    %80 = vector.shape_cast %79 : vector<16xf32> to vector<16x1xf32>
    %81 = vector.broadcast %80 : vector<16x1xf32> to vector<16x32xf32>
    %82 = arith.cmpf oeq, %78, %81 : vector<16x32xf32>
    %cst_32 = arith.constant 0.000000e+00 : f32
    %83 = vector.broadcast %cst_32 : f32 to vector<16x1xf32>
    %84 = arith.cmpf ogt, %80, %83 : vector<16x1xf32>
    %cst_33 = arith.constant 1.000000e+00 : f32
    %85 = vector.broadcast %cst_33 : f32 to vector<16x1xf32>
    %86 = arith.select %84, %80, %85 : vector<16x1xi1>, vector<16x1xf32>
    %cst_34 = arith.constant 1.000000e+00 : f32
    %87 = vector.broadcast %cst_34 : f32 to vector<16x1xf32>
    %88 = arith.divf %87, %86 : vector<16x1xf32>
    %cst_35 = arith.constant 0.000000e+00 : f32
    %89 = vector.broadcast %cst_35 : f32 to vector<16x1xf32>
    %90 = arith.cmpf ogt, %80, %89 : vector<16x1xf32>
    %cst_36 = arith.constant 0x7F800000 : f32
    %91 = vector.broadcast %cst_36 : f32 to vector<16x1xf32>
    %92 = arith.select %90, %88, %91 : vector<16x1xi1>, vector<16x1xf32>
    %93 = vector.shape_cast %92 : vector<16x1xf32> to vector<16x1xf32>
    %94 = vector.broadcast %93 : vector<16x1xf32> to vector<16x32xf32>
    %95 = arith.select %82, %94, %75 : vector<16x32xi1>, vector<16x32xf32>
    %96 = arith.addf %76, %92 : vector<16x1xf32>
    %97 = vector.broadcast %96 : vector<16x1xf32> to vector<16x32xf32>
    %98 = arith.divf %95, %97 : vector<16x32xf32>
    %99 = arith.cmpf one, %98, %98 : vector<16x32xf32>
    %cst_37 = arith.constant 1.000000e+00 : f32
    %100 = vector.broadcast %cst_37 : f32 to vector<16x32xf32>
    %101 = arith.select %99, %100, %98 : vector<16x32xi1>, vector<16x32xf32>
    %c0_38 = arith.constant 0 : index
    %c0_39 = arith.constant 0 : index
    %102 = vector.load %arg2[%c0_38, %c0_39] : memref<32x8xf32, #tpu.memory_space<vmem>>, vector<32x8xf32>
    %cst_40 = arith.constant dense<0.000000e+00> : vector<16x8xf32>
    %103 = tpu.matmul %101, %102, %cst_40 {dimension_numbers = #tpu.dot_dimension_numbers<[1], [0], [0], [1], [0, 0, 1, 1], [], []>} : vector<16x32xf32>, vector<32x8xf32>, vector<16x8xf32> -> vector<16x8xf32>
    %c0_41 = arith.constant 0 : index
    %c0_42 = arith.constant 0 : index
    %104 = vector.load %arg3[%c0_41, %c0_42] : memref<16x8xf32, #tpu.memory_space<vmem>>, vector<16x8xf32>
    %c0_43 = arith.constant 0 : index
    %c0_44 = arith.constant 0 : index
    %105 = vector.load %arg4[%c0_43, %c0_44] : memref<8x32xf32, #tpu.memory_space<vmem>>, vector<8x32xf32>
    %c0_45 = arith.constant 0 : index
    %c0_46 = arith.constant 0 : index
    %106 = vector.load %arg5[%c0_45, %c0_46] : memref<8x32xf32, #tpu.memory_space<vmem>>, vector<8x32xf32>
    %c0_47 = arith.constant 0 : index
    %c0_48 = arith.constant 0 : index
    %107 = vector.load %arg6[%c0_47, %c0_48] : memref<1x32xf32, #tpu.memory_space<vmem>>, vector<1x32xf32>
    %c0_49 = arith.constant 0 : index
    %c0_50 = arith.constant 0 : index
    %108 = vector.load %arg7[%c0_49, %c0_50] : memref<1x32xf32, #tpu.memory_space<vmem>>, vector<1x32xf32>
    %c0_51 = arith.constant 0 : index
    %c0_52 = arith.constant 0 : index
    %109 = vector.load %arg8[%c0_51, %c0_52] : memref<1x32xf32, #tpu.memory_space<vmem>>, vector<1x32xf32>
    %cst_53 = arith.constant dense<0.000000e+00> : vector<16x32xf32>
    %110 = tpu.matmul %104, %105, %cst_53 {dimension_numbers = #tpu.dot_dimension_numbers<[1], [0], [0], [1], [0, 0, 1, 1], [], []>} : vector<16x8xf32>, vector<8x32xf32>, vector<16x32xf32> -> vector<16x32xf32>
    %cst_54 = arith.constant dense<0.000000e+00> : vector<16x32xf32>
    %111 = tpu.matmul %103, %106, %cst_54 {dimension_numbers = #tpu.dot_dimension_numbers<[1], [0], [0], [1], [0, 0, 1, 1], [], []>} : vector<16x8xf32>, vector<8x32xf32>, vector<16x32xf32> -> vector<16x32xf32>
    %112 = arith.addf %110, %111 : vector<16x32xf32>
    %113 = vector.broadcast %107 : vector<1x32xf32> to vector<16x32xf32>
    %114 = arith.addf %112, %113 : vector<16x32xf32>
    %cst_55 = arith.constant dense<0.000000e+00> : vector<32xf32>
    %115 = vector.multi_reduction <add>, %114, %cst_55 [0] : vector<16x32xf32> to vector<32xf32>
    %116 = vector.shape_cast %115 : vector<32xf32> to vector<1x32xf32>
    %cst_56 = arith.constant 1.600000e+01 : f32
    %117 = vector.broadcast %cst_56 : f32 to vector<1x32xf32>
    %118 = arith.divf %116, %117 : vector<1x32xf32>
    %119 = vector.broadcast %118 : vector<1x32xf32> to vector<16x32xf32>
    %120 = arith.subf %114, %119 : vector<16x32xf32>
    %121 = arith.mulf %120, %120 : vector<16x32xf32>
    %cst_57 = arith.constant dense<0.000000e+00> : vector<32xf32>
    %122 = vector.multi_reduction <add>, %121, %cst_57 [0] : vector<16x32xf32> to vector<32xf32>
    %123 = vector.shape_cast %122 : vector<32xf32> to vector<1x32xf32>
    %cst_58 = arith.constant 1.600000e+01 : f32
    %124 = vector.broadcast %cst_58 : f32 to vector<1x32xf32>
    %125 = arith.divf %123, %124 : vector<1x32xf32>
    %cst_59 = arith.constant 9.99999974E-6 : f32
    %126 = vector.broadcast %cst_59 : f32 to vector<1x32xf32>
    %127 = arith.addf %125, %126 : vector<1x32xf32>
    %128 = math.rsqrt %127 : vector<1x32xf32>
    %129 = vector.broadcast %128 : vector<1x32xf32> to vector<16x32xf32>
    %130 = arith.mulf %120, %129 : vector<16x32xf32>
    %131 = vector.broadcast %108 : vector<1x32xf32> to vector<16x32xf32>
    %132 = arith.mulf %130, %131 : vector<16x32xf32>
    %133 = vector.broadcast %109 : vector<1x32xf32> to vector<16x32xf32>
    %134 = arith.addf %132, %133 : vector<16x32xf32>
    %cst_60 = arith.constant 0.000000e+00 : f32
    %135 = vector.broadcast %cst_60 : f32 to vector<16x32xf32>
    %136 = arith.maximumf %134, %135 : vector<16x32xf32>
    %c0_61 = arith.constant 0 : index
    %c0_62 = arith.constant 0 : index
    %137 = vector.load %arg9[%c0_61, %c0_62] : memref<32x16xf32, #tpu.memory_space<vmem>>, vector<32x16xf32>
    %c0_63 = arith.constant 0 : index
    %c0_64 = arith.constant 0 : index
    %138 = vector.load %arg10[%c0_63, %c0_64] : memref<1x16xf32, #tpu.memory_space<vmem>>, vector<1x16xf32>
    %cst_65 = arith.constant dense<0.000000e+00> : vector<16x16xf32>
    %139 = tpu.matmul %136, %137, %cst_65 {dimension_numbers = #tpu.dot_dimension_numbers<[1], [0], [0], [1], [0, 0, 1, 1], [], []>} : vector<16x32xf32>, vector<32x16xf32>, vector<16x16xf32> -> vector<16x16xf32>
    %140 = vector.broadcast %138 : vector<1x16xf32> to vector<16x16xf32>
    %141 = arith.addf %139, %140 : vector<16x16xf32>
    %c0_66 = arith.constant 0 : index
    %c0_67 = arith.constant 0 : index
    %142 = vector.load %arg13[%c0_66, %c0_67] : memref<16x16xf32, #tpu.memory_space<vmem>>, vector<16x16xf32>
    tpu.vector_store %arg13[%c0_66, %c0_67], %141 {strides = array<i32>} : memref<16x16xf32, #tpu.memory_space<vmem>>, vector<16x16xf32>,
    return
  }
}

</mosaic_0001>

<llo_original>
// kernel: seg_lay_forward.1
$region0: #{seg_lay_forward.1}
  #allocation0 [shape = 'u32[]', space=smem, size = 0x4, offset = 0x4, fixed_abs, tag = 'smem constant byte address 0x4 - core index']
  #allocation1 [shape = 'u32[144,128]{1,0:T(1,128)}', space=vmem, size = 0x12000, scoped, tag = 'internal scratch']
  %s0 = inlined_call_operand.vmem [shape: f32[16,3], index: 0, kind: input, shape index: {}]
  %s1 = inlined_call_operand.vmem [shape: f32[32,3], index: 1, kind: input, shape index: {}]
  %s2 = inlined_call_operand.vmem [shape: f32[32,8], index: 2, kind: input, shape index: {}]
  %s3 = inlined_call_operand.vmem [shape: f32[16,8], index: 3, kind: input, shape index: {}]
  %s4 = inlined_call_operand.vmem [shape: f32[8,32], index: 4, kind: input, shape index: {}]
  %s5 = inlined_call_operand.vmem [shape: f32[8,32], index: 5, kind: input, shape index: {}]
  %s6 = inlined_call_operand.vmem [shape: f32[1,32], index: 6, kind: input, shape index: {}]
  %s7 = inlined_call_operand.vmem [shape: f32[1,32], index: 7, kind: input, shape index: {}]
  %s8 = inlined_call_operand.vmem [shape: f32[1,32], index: 8, kind: input, shape index: {}]
  %s9 = inlined_call_operand.vmem [shape: f32[32,16], index: 9, kind: input, shape index: {}]
  %s10 = inlined_call_operand.vmem [shape: f32[1,16], index: 10, kind: input, shape index: {}]
  %s11 = inlined_call_operand.vmem [shape: f32[1,16], index: 11, kind: input, shape index: {}]
  %s12 = inlined_call_operand.vmem [shape: f32[1,16], index: 12, kind: input, shape index: {}]
  %s13 = inlined_call_operand.hbm [shape: f32[16,16], index: 13, kind: output, shape index: {}]
  %s14 = sld [smem:[#allocation0]]
  $region62: #{seg_lay_forward.1} parent=0
    _
  %s16 = ssub.s32 1, %s14
  %s17 = scalar_select 0, %s16, %s14
  $region1: #{seg_lay_forward.1} parent=0
    #allocation2 [shape = 'u8[8192]{0}', space=vmem, size = 0x2000, scoped, tag = 'output window, operand 0, single buffered']
    #allocation3 [shape = 's32[1]{0}', space=sflag, size = 0x4, scoped, tag = 'scoped memory for seg_lay_forward.1']
    %18 = vsyncpa [#allocation3], 0
    // Predicated region
    $region2: #{seg_lay_forward.1} parent=1 // pred_check
      _
    $region3: #{seg_lay_forward.1} parent=1 // pred_check_branch
      %20 = sbr.rel (0) target = $region5
    $region4: #{seg_lay_forward.1} parent=1 // pred_region
      _
    $region5: #{seg_lay_forward.1} parent=1 // pred_fallthru
      _
    // Predicated region
    $region6: #{seg_lay_forward.1} parent=1 // pred_check
      _
    $region7: #{seg_lay_forward.1} parent=1 // pred_check_branch
      %22 = sbr.rel (0) target = $region9
    $region8: #{seg_lay_forward.1} parent=1 // pred_region
      _
    $region9: #{seg_lay_forward.1} parent=1 // pred_fallthru
      _
    // Predicated region
    $region10: #{seg_lay_forward.1} parent=1 // pred_check
      _
    $region11: #{seg_lay_forward.1} parent=1 // pred_check_branch
      %24 = sbr.rel (0) target = $region13
    $region12: #{seg_lay_forward.1} parent=1 // pred_region
      _
    $region13: #{seg_lay_forward.1} parent=1 // pred_fallthru
      _
    // Predicated region
    $region14: #{seg_lay_forward.1} parent=1 // pred_check
      _
    $region15: #{seg_lay_forward.1} parent=1 // pred_check_branch
      %26 = sbr.rel (0) target = $region17
    $region16: #{seg_lay_forward.1} parent=1 // pred_region
      _
    $region17: #{seg_lay_forward.1} parent=1 // pred_fallthru
      _
    // Predicated region
    $region18: #{seg_lay_forward.1} parent=1 // pred_check
      _
    $region19: #{seg_lay_forward.1} parent=1 // pred_check_branch
      %28 = sbr.rel (0) target = $region21
    $region20: #{seg_lay_forward.1} parent=1 // pred_region
      _
    $region21: #{seg_lay_forward.1} parent=1 // pred_fallthru
      _
    // Predicated region
    $region22: #{seg_lay_forward.1} parent=1 // pred_check
      _
    $region23: #{seg_lay_forward.1} parent=1 // pred_check_branch
      %30 = sbr.rel (0) target = $region25
    $region24: #{seg_lay_forward.1} parent=1 // pred_region
      _
    $region25: #{seg_lay_forward.1} parent=1 // pred_fallthru
      _
    // Predicated region
    $region26: #{seg_lay_forward.1} parent=1 // pred_check
      _
    $region27: #{seg_lay_forward.1} parent=1 // pred_check_branch
      %32 = sbr.rel (0) target = $region29
    $region28: #{seg_lay_forward.1} parent=1 // pred_region
      _
    $region29: #{seg_lay_forward.1} parent=1 // pred_fallthru
      _
    // Predicated region
    $region30: #{seg_lay_forward.1} parent=1 // pred_check
      _
    $region31: #{seg_lay_forward.1} parent=1 // pred_check_branch
      %34 = sbr.rel (0) target = $region33
    $region32: #{seg_lay_forward.1} parent=1 // pred_region
      _
    $region33: #{seg_lay_forward.1} parent=1 // pred_fallthru
      _
    // Predicated region
    $region34: #{seg_lay_forward.1} parent=1 // pred_check
      _
    $region35: #{seg_lay_forward.1} parent=1 // pred_check_branch
      %36 = sbr.rel (0) target = $region37
    $region36: #{seg_lay_forward.1} parent=1 // pred_region
      _
    $region37: #{seg_lay_forward.1} parent=1 // pred_fallthru
      _
    // Predicated region
    $region38: #{seg_lay_forward.1} parent=1 // pred_check
      _
    $region39: #{seg_lay_forward.1} parent=1 // pred_check_branch
      %38 = sbr.rel (0) target = $region41
    $region40: #{seg_lay_forward.1} parent=1 // pred_region
      _
    $region41: #{seg_lay_forward.1} parent=1 // pred_fallthru
      _
    // Predicated region
    $region42: #{seg_lay_forward.1} parent=1 // pred_check
      _
    $region43: #{seg_lay_forward.1} parent=1 // pred_check_branch
      %40 = sbr.rel (0) target = $region45
    $region44: #{seg_lay_forward.1} parent=1 // pred_region
      _
    $region45: #{seg_lay_forward.1} parent=1 // pred_fallthru
      _
    // Predicated region
    $region46: #{seg_lay_forward.1} parent=1 // pred_check
      _
    $region47: #{seg_lay_forward.1} parent=1 // pred_check_branch
      %42 = sbr.rel (0) target = $region49
    $region48: #{seg_lay_forward.1} parent=1 // pred_region
      _
    $region49: #{seg_lay_forward.1} parent=1 // pred_fallthru
      _
    // Predicated region
    $region50: #{seg_lay_forward.1} parent=1 // pred_check
      _
    $region51: #{seg_lay_forward.1} parent=1 // pred_check_branch
      %44 = sbr.rel (0) target = $region53
    $region52: #{seg_lay_forward.1} parent=1 // pred_region
      _
    $region53: #{seg_lay_forward.1} parent=1 // pred_fallthru
      _
    %v45 = vld [vmem:[%s0] sm:$0xff]
    %v46 = vld [vmem:[%s0 + $0x8] sm:$0xff]
    %v47 = vld [vmem:[%s1] sm:$0xff]
    %v48 = vld [vmem:[%s1 + $0x8] sm:$0xff]
    %v49 = vld [vmem:[%s1 + $0x10] sm:$0xff]
    %v50 = vld [vmem:[%s1 + $0x18] sm:$0xff]
    %vm51 = vcmask 23552
    %v53 = vsel %vm51, %v45, 0
    %v56 = vsel %vm51, %v46, 0
    %v59 = vsel %vm51, %v47, 0
    %v62 = vsel %vm51, %v48, 0
    %v65 = vsel %vm51, %v49, 0
    %v68 = vsel %vm51, %v50, 0
    %70 = vmatprep.subr.mxu0 0.0
    %71 = vmatpush1.xpose.msra.mxu0 0.0
    %72 = vmatprep.subr.mxu0 0.0
    %73 = vmatpush1.xpose.msra.mxu0 0.0
    %74 = vmatprep.subr.mxu0 0.0
    %75 = vmatpush1.xpose.msra.mxu0 0.0
    %76 = vmatprep.subr.mxu0 0.0
    %77 = vmatpush1.xpose.msra.mxu0 0.0
    %78 = vmatprep.subr.mxu0 0.0
    %79 = vmatpush1.xpose.msra.mxu0 0.0
    %80 = vmatprep.subr.mxu0 0.0
    %81 = vmatpush1.xpose.msra.mxu0 0.0
    %82 = vmatprep.subr.mxu0 0.0
    %83 = vmatpush1.xpose.msra.mxu0 0.0
    %84 = vmatprep.subr.mxu0 0.0
    %85 = vmatpush1.xpose.msra.mxu0 0.0
    %86 = vmatprep.subr.mxu0 0.0
    %87 = vmatpush1.xpose.msra.mxu0 0.0
    %88 = vmatprep.subr.mxu0 0.0
    %89 = vmatpush1.xpose.msra.mxu0 0.0
    %90 = vmatprep.subr.mxu0 0.0
    %91 = vmatpush1.xpose.msra.mxu0 0.0
    %92 = vmatprep.subr.mxu0 0.0
    %93 = vmatpush1.xpose.msra.mxu0 0.0
    %94 = vmatprep.subr.mxu0 0.0
    %95 = vmatpush1.xpose.msra.mxu0 %v68
    %96 = vmatprep.subr.mxu0 0.0
    %97 = vmatpush1.xpose.msra.mxu0 %v65
    %98 = vmatprep.subr.mxu0 0.0
    %99 = vmatpush1.xpose.msra.mxu0 %v62
    %100 = vmatprep.subr.mxu0 0.0
    %101 = vmatpush1.xpose.msra.mxu0 %v59
    %102 = vmatprep.subr.mxu0 0.0
    %103 = vmatpush2.xpose.msra.mxu0 0.0
    %104 = vmatprep.subr.mxu0 0.0
    %105 = vmatpush2.xpose.msra.mxu0 0.0
    %106 = vmatprep.subr.mxu0 0.0
    %107 = vmatpush2.xpose.msra.mxu0 0.0
    %108 = vmatprep.subr.mxu0 0.0
    %109 = vmatpush2.xpose.msra.mxu0 0.0
    %110 = vmatprep.subr.mxu0 0.0
    %111 = vmatpush2.xpose.msra.mxu0 0.0
    %112 = vmatprep.subr.mxu0 0.0
    %113 = vmatpush2.xpose.msra.mxu0 0.0
    %114 = vmatprep.subr.mxu0 0.0
    %115 = vmatpush2.xpose.msra.mxu0 0.0
    %116 = vmatprep.subr.mxu0 0.0
    %117 = vmatpush2.xpose.msra.mxu0 0.0
    %118 = vmatprep.subr.mxu0 0.0
    %119 = vmatpush2.xpose.msra.mxu0 0.0
    %120 = vmatprep.subr.mxu0 0.0
    %121 = vmatpush2.xpose.msra.mxu0 0.0
    %122 = vmatprep.subr.mxu0 0.0
    %123 = vmatpush2.xpose.msra.mxu0 0.0
    %124 = vmatprep.subr.mxu0 0.0
    %125 = vmatpush2.xpose.msra.mxu0 0.0
    %126 = vmatprep.subr.mxu0 0.0
    %127 = vmatpush2.xpose.msra.mxu0 0.0
    %128 = vmatprep.subr.mxu0 0.0
    %129 = vmatpush2.xpose.msra.mxu0 0.0
    %130 = vmatprep.subr.mxu0 0.0
    %131 = vmatpush2.xpose.msra.mxu0 0.0
    %132 = vmatprep.subr.mxu0 0.0
    %133 = vmatpush2.xpose.msra.mxu0 0.0
    %134 = vmatprep.mubr.f32.mxu0 0.0
    %135 = vmatmul.mubr.f32.gmra.mxu0 %v53
    %v136 = vpop.f32.mrf.mxu0
    %v137 = vadd.f32 0.0, %v136
    %v138 = vpop.f32.mrf.mxu0
    %139 = vmatprep.mubr.f32.mxu0 0.0
    %140 = vmatmul.mubr.f32.gmra.mxu0 %v56
    %v141 = vpop.f32.mrf.mxu0
    %v142 = vadd.f32 0.0, %v141
    %v143 = vpop.f32.mrf.mxu0
    %144 = vdwg.mxu0
    %v145 = vmul.f32 %v47, %v47
    %v146 = vmul.f32 %v48, %v48
    %v147 = vmul.f32 %v49, %v49
    %v148 = vmul.f32 %v50, %v50
    %v150 = vsel %vm51, 1.0, 0
    %v153 = vsel %vm51, %v145, 0
    %v156 = vsel %vm51, %v146, 0
    %v159 = vsel %vm51, %v147, 0
    %v162 = vsel %vm51, %v148, 0
    %164 = vmatprep.subr.mxu0 0.0
    %165 = vmatpush1.xpose.msra.mxu0 0.0
    %166 = vmatprep.subr.mxu0 0.0
    %167 = vmatpush1.xpose.msra.mxu0 0.0
    %168 = vmatprep.subr.mxu0 0.0
    %169 = vmatpush1.xpose.msra.mxu0 0.0
    %170 = vmatprep.subr.mxu0 0.0
    %171 = vmatpush1.xpose.msra.mxu0 0.0
    %172 = vmatprep.subr.mxu0 0.0
    %173 = vmatpush1.xpose.msra.mxu0 0.0
    %174 = vmatprep.subr.mxu0 0.0
    %175 = vmatpush1.xpose.msra.mxu0 0.0
    %176 = vmatprep.subr.mxu0 0.0
    %177 = vmatpush1.xpose.msra.mxu0 0.0
    %178 = vmatprep.subr.mxu0 0.0
    %179 = vmatpush1.xpose.msra.mxu0 0.0
    %180 = vmatprep.subr.mxu0 0.0
    %181 = vmatpush1.xpose.msra.mxu0 0.0
    %182 = vmatprep.subr.mxu0 0.0
    %183 = vmatpush1.xpose.msra.mxu0 0.0
    %184 = vmatprep.subr.mxu0 0.0
    %185 = vmatpush1.xpose.msra.mxu0 0.0
    %186 = vmatprep.subr.mxu0 0.0
    %187 = vmatpush1.xpose.msra.mxu0 0.0
    %188 = vmatprep.subr.mxu0 0.0
    %189 = vmatpush1.xpose.msra.mxu0 %v162
    %190 = vmatprep.subr.mxu0 0.0
    %191 = vmatpush1.xpose.msra.mxu0 %v159
    %192 = vmatprep.subr.mxu0 0.0
    %193 = vmatpush1.xpose.msra.mxu0 %v156
    %194 = vmatprep.subr.mxu0 0.0
    %195 = vmatpush1.xpose.msra.mxu0 %v153
    %196 = vmatprep.subr.mxu0 0.0
    %197 = vmatpush2.xpose.msra.mxu0 0.0
    %198 = vmatprep.subr.mxu0 0.0
    %199 = vmatpush2.xpose.msra.mxu0 0.0
    %200 = vmatprep.subr.mxu0 0.0
    %201 = vmatpush2.xpose.msra.mxu0 0.0
    %202 = vmatprep.subr.mxu0 0.0
    %203 = vmatpush2.xpose.msra.mxu0 0.0
    %204 = vmatprep.subr.mxu0 0.0
    %205 = vmatpush2.xpose.msra.mxu0 0.0
    %206 = vmatprep.subr.mxu0 0.0
    %207 = vmatpush2.xpose.msra.mxu0 0.0
    %208 = vmatprep.subr.mxu0 0.0
    %209 = vmatpush2.xpose.msra.mxu0 0.0
    %210 = vmatprep.subr.mxu0 0.0
    %211 = vmatpush2.xpose.msra.mxu0 0.0
    %212 = vmatprep.subr.mxu0 0.0
    %213 = vmatpush2.xpose.msra.mxu0 0.0
    %214 = vmatprep.subr.mxu0 0.0
    %215 = vmatpush2.xpose.msra.mxu0 0.0
    %216 = vmatprep.subr.mxu0 0.0
    %217 = vmatpush2.xpose.msra.mxu0 0.0
    %218 = vmatprep.subr.mxu0 0.0
    %219 = vmatpush2.xpose.msra.mxu0 0.0
    %220 = vmatprep.subr.mxu0 0.0
    %221 = vmatpush2.xpose.msra.mxu0 0.0
    %222 = vmatprep.subr.mxu0 0.0
    %223 = vmatpush2.xpose.msra.mxu0 0.0
    %224 = vmatprep.subr.mxu0 0.0
    %225 = vmatpush2.xpose.msra.mxu0 0.0
    %226 = vmatprep.subr.mxu0 0.0
    %227 = vmatpush2.xpose.msra.mxu0 0.0
    %228 = vmatprep.mubr.f32.mxu0 0.0
    %229 = vmatmul.mubr.f32.gmra.mxu0 %v150
    %v230 = vpop.f32.mrf.mxu0
    %v231 = vadd.f32 0.0, %v230
    %v232 = vpop.f32.mrf.mxu0
    %233 = vdwg.mxu0
    %v234 = vmul.f32 %v45, %v45
    %v235 = vmul.f32 %v46, %v46
    %v236 = vsel %vm51, %v234, 0.0
    %237 = vadd.xlane.f32.xlu0 %v236
    %v238 = vpop.xlane.xlu0 %237
    %v239 = vsel %vm51, %v235, 0.0
    %240 = vadd.xlane.f32.xlu0 %v239
    %v241 = vpop.xlane.xlu0 %240
    %v242 = vmul.f32 %v137, 2.0
    %v243 = vmul.f32 %v142, 2.0
    %v244 = vsub.f32 %v238, %v242
    %v245 = vsub.f32 %v241, %v243
    %v246 = vlaneseq
    %v247 = vshrl.u32 %v246, 7
    %v248 = vsub.s32 0, %v247
    %v249 = vrot.slane %v231, %v248
    %v250 = vadd.f32 %v244, %v249
    %v251 = vadd.f32 %v245, %v249
    %v252 = vmax.f32 %v250, 0.0
    %v253 = vmax.f32 %v251, 0.0
    %vm254 = vcmask 261120
    %v255 = vsel %vm254, %v252, inf
    %256 = vmin.xlane.f32.xlu0 %v255
    %v257 = vpop.xlane.xlu0 %256
    %v258 = vsel %vm254, %v253, inf
    %259 = vmin.xlane.f32.xlu0 %v258
    %v260 = vpop.xlane.xlu0 %259
    %vm261 = vcmp.eq.f32.partialorder %v252, %v257
    %vm262 = vcmp.eq.f32.partialorder %v253, %v260
    %vm263 = vcmp.gt.f32.partialorder %v257, 0.0
    %vm264 = vcmp.gt.f32.partialorder %v260, 0.0
    %v265 = vsel %vm263, %v257, 1.0
    %v266 = vsel %vm264, %v260, 1.0
    %v267 = vrcp.pop %v265
    %v268 = vmul.f32 1.0, %v267
    %v269 = vrcp.pop %v266
    %v270 = vmul.f32 1.0, %v269
    %v271 = vsel %vm263, %v268, inf
    %v272 = vsel %vm264, %v270, inf
    %v273 = vsel %vm261, %v271, 0.0
    %v274 = vsel %vm262, %v272, 0.0
    %v275 = vadd.f32 %v271, 0.0
    %v276 = vadd.f32 %v272, 0.0
    %v277 = vsel %vm261, inf, %v252
    %v278 = vsel %vm262, inf, %v253
    %v279 = vsel %vm254, %v277, inf
    %280 = vmin.xlane.f32.xlu0 %v279
    %v281 = vpop.xlane.xlu0 %280
    %v282 = vsel %vm254, %v278, inf
    %283 = vmin.xlane.f32.xlu0 %v282
    %v284 = vpop.xlane.xlu0 %283
    %vm285 = vcmp.eq.f32.partialorder %v277, %v281
    %vm286 = vcmp.eq.f32.partialorder %v278, %v284
    %vm287 = vcmp.gt.f32.partialorder %v281, 0.0
    %vm288 = vcmp.gt.f32.partialorder %v284, 0.0
    %v289 = vsel %vm287, %v281, 1.0
    %v290 = vsel %vm288, %v284, 1.0
    %v291 = vrcp.pop %v289
    %v292 = vmul.f32 1.0, %v291
    %v293 = vrcp.pop %v290
    %v294 = vmul.f32 1.0, %v293
    %v295 = vsel %vm287, %v292, inf
    %v296 = vsel %vm288, %v294, inf
    %v297 = vsel %vm285, %v295, %v273
    %v298 = vsel %vm286, %v296, %v274
    %v299 = vadd.f32 %v275, %v295
    %v300 = vadd.f32 %v276, %v296
    %v301 = vsel %vm285, inf, %v277
    %v302 = vsel %vm286, inf, %v278
    %v303 = vsel %vm254, %v301, inf
    %304 = vmin.xlane.f32.xlu0 %v303
    %v305 = vpop.xlane.xlu0 %304
    %v306 = vsel %vm254, %v302, inf
    %307 = vmin.xlane.f32.xlu0 %v306
    %v308 = vpop.xlane.xlu0 %307
    %vm309 = vcmp.eq.f32.partialorder %v301, %v305
    %vm310 = vcmp.eq.f32.partialorder %v302, %v308
    %vm311 = vcmp.gt.f32.partialorder %v305, 0.0
    %vm312 = vcmp.gt.f32.partialorder %v308, 0.0
    %v313 = vsel %vm311, %v305, 1.0
    %v314 = vsel %vm312, %v308, 1.0
    %v315 = vrcp.pop %v313
    %v316 = vmul.f32 1.0, %v315
    %v317 = vrcp.pop %v314
    %v318 = vmul.f32 1.0, %v317
    %v319 = vsel %vm311, %v316, inf
    %v320 = vsel %vm312, %v318, inf
    %v321 = vsel %vm309, %v319, %v297
    %v322 = vsel %vm310, %v320, %v298
    %v323 = vadd.f32 %v299, %v319
    %v324 = vadd.f32 %v300, %v320
    %v325 = vsel %vm309, inf, %v301
    %v326 = vsel %vm310, inf, %v302
    %v327 = vsel %vm254, %v325, inf
    %328 = vmin.xlane.f32.xlu0 %v327
    %v329 = vpop.xlane.xlu0 %328
    %v330 = vsel %vm254, %v326, inf
    %331 = vmin.xlane.f32.xlu0 %v330
    %v332 = vpop.xlane.xlu0 %331
    %vm333 = vcmp.eq.f32.partialorder %v325, %v329
    %vm334 = vcmp.eq.f32.partialorder %v326, %v332
    %vm335 = vcmp.gt.f32.partialorder %v329, 0.0
    %vm336 = vcmp.gt.f32.partialorder %v332, 0.0
    %v337 = vsel %vm335, %v329, 1.0
    %v338 = vsel %vm336, %v332, 1.0
    %v339 = vrcp.pop %v337
    %v340 = vmul.f32 1.0, %v339
    %v341 = vrcp.pop %v338
    %v342 = vmul.f32 1.0, %v341
    %v343 = vsel %vm335, %v340, inf
    %v344 = vsel %vm336, %v342, inf
    %v345 = vsel %vm333, %v343, %v321
    %v346 = vsel %vm334, %v344, %v322
    %v347 = vadd.f32 %v323, %v343
    %v348 = vadd.f32 %v324, %v344
    %v349 = vrcp.pop %v347
    %v350 = vmul.f32 %v345, %v349
    %v351 = vrcp.pop %v348
    %v352 = vmul.f32 %v346, %v351
    %vm353 = vcmp.ne.f32.partialorder %v350, %v350
    %vm354 = vcmp.ne.f32.partialorder %v352, %v352
    %v355 = vsel %vm353, 1.0, %v350
    %v356 = vsel %vm354, 1.0, %v352
    %v357 = vld [vmem:[%s2] sm:$0xff]
    %v358 = vld [vmem:[%s2 + $0x8] sm:$0xff]
    %v359 = vld [vmem:[%s2 + $0x10] sm:$0xff]
    %v360 = vld [vmem:[%s2 + $0x18] sm:$0xff]
    %v362 = vsel %vm254, %v355, 0
    %v365 = vsel %vm254, %v356, 0
    %367 = vmatprep.subr.mxu0 0.0
    %368 = vmatpush1.msra.mxu0 0.0
    %369 = vmatprep.subr.mxu0 0.0
    %370 = vmatpush1.msra.mxu0 0.0
    %371 = vmatprep.subr.mxu0 0.0
    %372 = vmatpush1.msra.mxu0 0.0
    %373 = vmatprep.subr.mxu0 0.0
    %374 = vmatpush1.msra.mxu0 0.0
    %375 = vmatprep.subr.mxu0 0.0
    %376 = vmatpush1.msra.mxu0 0.0
    %377 = vmatprep.subr.mxu0 0.0
    %378 = vmatpush1.msra.mxu0 0.0
    %379 = vmatprep.subr.mxu0 0.0
    %380 = vmatpush1.msra.mxu0 0.0
    %381 = vmatprep.subr.mxu0 0.0
    %382 = vmatpush1.msra.mxu0 0.0
    %383 = vmatprep.subr.mxu0 0.0
    %384 = vmatpush1.msra.mxu0 0.0
    %385 = vmatprep.subr.mxu0 0.0
    %386 = vmatpush1.msra.mxu0 0.0
    %387 = vmatprep.subr.mxu0 0.0
    %388 = vmatpush1.msra.mxu0 0.0
    %389 = vmatprep.subr.mxu0 0.0
    %390 = vmatpush1.msra.mxu0 0.0
    %391 = vmatprep.subr.mxu0 0.0
    %392 = vmatpush1.msra.mxu0 %v360
    %393 = vmatprep.subr.mxu0 0.0
    %394 = vmatpush1.msra.mxu0 %v359
    %395 = vmatprep.subr.mxu0 0.0
    %396 = vmatpush1.msra.mxu0 %v358
    %397 = vmatprep.subr.mxu0 0.0
    %398 = vmatpush1.msra.mxu0 %v357
    %399 = vmatprep.subr.mxu0 0.0
    %400 = vmatpush2.msra.mxu0 0.0
    %401 = vmatprep.subr.mxu0 0.0
    %402 = vmatpush2.msra.mxu0 0.0
    %403 = vmatprep.subr.mxu0 0.0
    %404 = vmatpush2.msra.mxu0 0.0
    %405 = vmatprep.subr.mxu0 0.0
    %406 = vmatpush2.msra.mxu0 0.0
    %407 = vmatprep.subr.mxu0 0.0
    %408 = vmatpush2.msra.mxu0 0.0
    %409 = vmatprep.subr.mxu0 0.0
    %410 = vmatpush2.msra.mxu0 0.0
    %411 = vmatprep.subr.mxu0 0.0
    %412 = vmatpush2.msra.mxu0 0.0
    %413 = vmatprep.subr.mxu0 0.0
    %414 = vmatpush2.msra.mxu0 0.0
    %415 = vmatprep.subr.mxu0 0.0
    %416 = vmatpush2.msra.mxu0 0.0
    %417 = vmatprep.subr.mxu0 0.0
    %418 = vmatpush2.msra.mxu0 0.0
    %419 = vmatprep.subr.mxu0 0.0
    %420 = vmatpush2.msra.mxu0 0.0
    %421 = vmatprep.subr.mxu0 0.0
    %422 = vmatpush2.msra.mxu0 0.0
    %423 = vmatprep.subr.mxu0 0.0
    %424 = vmatpush2.msra.mxu0 0.0
    %425 = vmatprep.subr.mxu0 0.0
    %426 = vmatpush2.msra.mxu0 0.0
    %427 = vmatprep.subr.mxu0 0.0
    %428 = vmatpush2.msra.mxu0 0.0
    %429 = vmatprep.subr.mxu0 0.0
    %430 = vmatpush2.msra.mxu0 0.0
    %431 = vmatprep.mubr.f32.mxu0 0.0
    %432 = vmatmul.mubr.f32.gmra.mxu0 %v362
    %v433 = vpop.f32.mrf.mxu0
    %v434 = vadd.f32 0.0, %v433
    %v435 = vpop.f32.mrf.mxu0
    %436 = vmatprep.mubr.f32.mxu0 0.0
    %437 = vmatmul.mubr.f32.gmra.mxu0 %v365
    %v438 = vpop.f32.mrf.mxu0
    %v439 = vadd.f32 0.0, %v438
    %v440 = vpop.f32.mrf.mxu0
    %441 = vdwg.mxu0
    %v442 = vld [vmem:[%s3] sm:$0xff]
    %v443 = vld [vmem:[%s3 + $0x8] sm:$0xff]
    %v444 = vld [vmem:[%s4] sm:$0xff]
    %v445 = vld [vmem:[%s5] sm:$0xff]
    %v446 = vld [vmem:[%s6] sm:$0x1]
    %v447 = vld [vmem:[%s7] sm:$0x1]
    %v448 = vld [vmem:[%s8] sm:$0x1]
    %vm449 = vcmask 64512
    %v451 = vsel %vm449, %v434, 0
    %v454 = vsel %vm449, %v439, 0
    %456 = vmatprep.subr.mxu0 0.0
    %457 = vmatpush1.msra.mxu0 0.0
    %458 = vmatprep.subr.mxu0 0.0
    %459 = vmatpush1.msra.mxu0 0.0
    %460 = vmatprep.subr.mxu0 0.0
    %461 = vmatpush1.msra.mxu0 0.0
    %462 = vmatprep.subr.mxu0 0.0
    %463 = vmatpush1.msra.mxu0 0.0
    %464 = vmatprep.subr.mxu0 0.0
    %465 = vmatpush1.msra.mxu0 0.0
    %466 = vmatprep.subr.mxu0 0.0
    %467 = vmatpush1.msra.mxu0 0.0
    %468 = vmatprep.subr.mxu0 0.0
    %469 = vmatpush1.msra.mxu0 0.0
    %470 = vmatprep.subr.mxu0 0.0
    %471 = vmatpush1.msra.mxu0 0.0
    %472 = vmatprep.subr.mxu0 0.0
    %473 = vmatpush1.msra.mxu0 0.0
    %474 = vmatprep.subr.mxu0 0.0
    %475 = vmatpush1.msra.mxu0 0.0
    %476 = vmatprep.subr.mxu0 0.0
    %477 = vmatpush1.msra.mxu0 0.0
    %478 = vmatprep.subr.mxu0 0.0
    %479 = vmatpush1.msra.mxu0 0.0
    %480 = vmatprep.subr.mxu0 0.0
    %481 = vmatpush1.msra.mxu0 0.0
    %482 = vmatprep.subr.mxu0 0.0
    %483 = vmatpush1.msra.mxu0 0.0
    %484 = vmatprep.subr.mxu0 0.0
    %485 = vmatpush1.msra.mxu0 0.0
    %486 = vmatprep.subr.mxu0 0.0
    %487 = vmatpush1.msra.mxu0 %v445
    %488 = vmatprep.subr.mxu0 0.0
    %489 = vmatpush2.msra.mxu0 0.0
    %490 = vmatprep.subr.mxu0 0.0
    %491 = vmatpush2.msra.mxu0 0.0
    %492 = vmatprep.subr.mxu0 0.0
    %493 = vmatpush2.msra.mxu0 0.0
    %494 = vmatprep.subr.mxu0 0.0
    %495 = vmatpush2.msra.mxu0 0.0
    %496 = vmatprep.subr.mxu0 0.0
    %497 = vmatpush2.msra.mxu0 0.0
    %498 = vmatprep.subr.mxu0 0.0
    %499 = vmatpush2.msra.mxu0 0.0
    %500 = vmatprep.subr.mxu0 0.0
    %501 = vmatpush2.msra.mxu0 0.0
    %502 = vmatprep.subr.mxu0 0.0
    %503 = vmatpush2.msra.mxu0 0.0
    %504 = vmatprep.subr.mxu0 0.0
    %505 = vmatpush2.msra.mxu0 0.0
    %506 = vmatprep.subr.mxu0 0.0
    %507 = vmatpush2.msra.mxu0 0.0
    %508 = vmatprep.subr.mxu0 0.0
    %509 = vmatpush2.msra.mxu0 0.0
    %510 = vmatprep.subr.mxu0 0.0
    %511 = vmatpush2.msra.mxu0 0.0
    %512 = vmatprep.subr.mxu0 0.0
    %513 = vmatpush2.msra.mxu0 0.0
    %514 = vmatprep.subr.mxu0 0.0
    %515 = vmatpush2.msra.mxu0 0.0
    %516 = vmatprep.subr.mxu0 0.0
    %517 = vmatpush2.msra.mxu0 0.0
    %518 = vmatprep.subr.mxu0 0.0
    %519 = vmatpush2.msra.mxu0 0.0
    %520 = vmatprep.mubr.f32.mxu0 0.0
    %521 = vmatmul.mubr.f32.gmra.mxu0 %v451
    %v522 = vpop.f32.mrf.mxu0
    %v523 = vadd.f32 0.0, %v522
    %v524 = vpop.f32.mrf.mxu0
    %525 = vmatprep.mubr.f32.mxu0 0.0
    %526 = vmatmul.mubr.f32.gmra.mxu0 %v454
    %v527 = vpop.f32.mrf.mxu0
    %v528 = vadd.f32 0.0, %v527
    %v529 = vpop.f32.mrf.mxu0
    %530 = vdwg.mxu0
    %v532 = vsel %vm449, %v442, 0
    %v535 = vsel %vm449, %v443, 0
    %537 = vmatprep.subr.mxu0 0.0
    %538 = vmatpush1.msra.mxu0 0.0
    %539 = vmatprep.subr.mxu0 0.0
    %540 = vmatpush1.msra.mxu0 0.0
    %541 = vmatprep.subr.mxu0 0.0
    %542 = vmatpush1.msra.mxu0 0.0
    %543 = vmatprep.subr.mxu0 0.0
    %544 = vmatpush1.msra.mxu0 0.0
    %545 = vmatprep.subr.mxu0 0.0
    %546 = vmatpush1.msra.mxu0 0.0
    %547 = vmatprep.subr.mxu0 0.0
    %548 = vmatpush1.msra.mxu0 0.0
    %549 = vmatprep.subr.mxu0 0.0
    %550 = vmatpush1.msra.mxu0 0.0
    %551 = vmatprep.subr.mxu0 0.0
    %552 = vmatpush1.msra.mxu0 0.0
    %553 = vmatprep.subr.mxu0 0.0
    %554 = vmatpush1.msra.mxu0 0.0
    %555 = vmatprep.subr.mxu0 0.0
    %556 = vmatpush1.msra.mxu0 0.0
    %557 = vmatprep.subr.mxu0 0.0
    %558 = vmatpush1.msra.mxu0 0.0
    %559 = vmatprep.subr.mxu0 0.0
    %560 = vmatpush1.msra.mxu0 0.0
    %561 = vmatprep.subr.mxu0 0.0
    %562 = vmatpush1.msra.mxu0 0.0
    %563 = vmatprep.subr.mxu0 0.0
    %564 = vmatpush1.msra.mxu0 0.0
    %565 = vmatprep.subr.mxu0 0.0
    %566 = vmatpush1.msra.mxu0 0.0
    %567 = vmatprep.subr.mxu0 0.0
    %568 = vmatpush1.msra.mxu0 %v444
    %569 = vmatprep.subr.mxu0 0.0
    %570 = vmatpush2.msra.mxu0 0.0
    %571 = vmatprep.subr.mxu0 0.0
    %572 = vmatpush2.msra.mxu0 0.0
    %573 = vmatprep.subr.mxu0 0.0
    %574 = vmatpush2.msra.mxu0 0.0
    %575 = vmatprep.subr.mxu0 0.0
    %576 = vmatpush2.msra.mxu0 0.0
    %577 = vmatprep.subr.mxu0 0.0
    %578 = vmatpush2.msra.mxu0 0.0
    %579 = vmatprep.subr.mxu0 0.0
    %580 = vmatpush2.msra.mxu0 0.0
    %581 = vmatprep.subr.mxu0 0.0
    %582 = vmatpush2.msra.mxu0 0.0
    %583 = vmatprep.subr.mxu0 0.0
    %584 = vmatpush2.msra.mxu0 0.0
    %585 = vmatprep.subr.mxu0 0.0
    %586 = vmatpush2.msra.mxu0 0.0
    %587 = vmatprep.subr.mxu0 0.0
    %588 = vmatpush2.msra.mxu0 0.0
    %589 = vmatprep.subr.mxu0 0.0
    %590 = vmatpush2.msra.mxu0 0.0
    %591 = vmatprep.subr.mxu0 0.0
    %592 = vmatpush2.msra.mxu0 0.0
    %593 = vmatprep.subr.mxu0 0.0
    %594 = vmatpush2.msra.mxu0 0.0
    %595 = vmatprep.subr.mxu0 0.0
    %596 = vmatpush2.msra.mxu0 0.0
    %597 = vmatprep.subr.mxu0 0.0
    %598 = vmatpush2.msra.mxu0 0.0
    %599 = vmatprep.subr.mxu0 0.0
    %600 = vmatpush2.msra.mxu0 0.0
    %601 = vmatprep.mubr.f32.mxu0 0.0
    %602 = vmatmul.mubr.f32.gmra.mxu0 %v532
    %v603 = vpop.f32.mrf.mxu0
    %v604 = vadd.f32 %v523, %v603
    %v605 = vpop.f32.mrf.mxu0
    %606 = vmatprep.mubr.f32.mxu0 0.0
    %607 = vmatmul.mubr.f32.gmra.mxu0 %v535
    %v608 = vpop.f32.mrf.mxu0
    %v609 = vadd.f32 %v528, %v608
    %v610 = vpop.f32.mrf.mxu0
    %611 = vdwg.mxu0
    %v613 = vlaneseq
    %v614 = vshrl.u32 %v613, 7
    %v615 = vsub.s32 0, %v614
    %v616 = vrot.slane %v446, %v615
    %v618 = vadd.f32 %v604, %v616
    %v619 = vadd.f32 %v609, %v616
    %v620 = vsel %vm254, %v618, 0.0
    %v621 = vsel %vm254, %v619, 0.0
    %v622 = vadd.f32 %v620, %v621
    %v623 = vrot.slane %v622, 4
    %v624 = vadd.f32 %v622, %v623
    %v625 = vrot.slane %v624, 2
    %v626 = vadd.f32 %v624, %v625
    %v627 = vrot.slane %v626, 1
    %v628 = vadd.f32 %v626, %v627
    %v629 = vrcp.pop 16.0
    %v630 = vmul.f32 %v628, %v629
    %v631 = vsub.f32 %v618, %v630
    %v632 = vsub.f32 %v619, %v630
    %v633 = vmul.f32 %v631, %v631
    %v634 = vmul.f32 %v632, %v632
    %v635 = vsel %vm254, %v633, 0.0
    %v636 = vsel %vm254, %v634, 0.0
    %v637 = vadd.f32 %v635, %v636
    %v638 = vrot.slane %v637, 4
    %v639 = vadd.f32 %v637, %v638
    %v640 = vrot.slane %v639, 2
    %v641 = vadd.f32 %v639, %v640
    %v642 = vrot.slane %v641, 1
    %v643 = vadd.f32 %v641, %v642
    %v644 = vmul.f32 %v643, %v629
    %v645 = vadd.f32 %v644, 1e-05
    %v646 = vrsqrt.pop %v645
    %v647 = vmul.f32 %v631, %v646
    %v648 = vmul.f32 %v632, %v646
    %v650 = vlaneseq
    %v651 = vshrl.u32 %v650, 7
    %v652 = vsub.s32 0, %v651
    %v653 = vrot.slane %v447, %v652
    %v655 = vmul.f32 %v647, %v653
    %v656 = vmul.f32 %v648, %v653
    %v658 = vlaneseq
    %v659 = vshrl.u32 %v658, 7
    %v660 = vsub.s32 0, %v659
    %v661 = vrot.slane %v448, %v660
    %v663 = vadd.f32 %v655, %v661
    %v664 = vadd.f32 %v656, %v661
    %v665 = vmax.f32 %v663, 0.0
    %v666 = vmax.f32 %v664, 0.0
    %v667 = vld [vmem:[%s9] sm:$0xff]
    %v668 = vld [vmem:[%s9 + $0x8] sm:$0xff]
    %v669 = vld [vmem:[%s9 + $0x10] sm:$0xff]
    %v670 = vld [vmem:[%s9 + $0x18] sm:$0xff]
    %v671 = vld [vmem:[%s10] sm:$0x1]
    %v673 = vlaneseq
    %v674 = vshrl.u32 %v673, 7
    %v675 = vsub.s32 0, %v674
    %v676 = vrot.slane %v671, %v675
    %v679 = vsel %vm254, %v665, 0
    %v682 = vsel %vm254, %v666, 0
    %684 = vmatprep.subr.mxu0 0.0
    %685 = vmatpush1.msra.mxu0 0.0
    %686 = vmatprep.subr.mxu0 0.0
    %687 = vmatpush1.msra.mxu0 0.0
    %688 = vmatprep.subr.mxu0 0.0
    %689 = vmatpush1.msra.mxu0 0.0
    %690 = vmatprep.subr.mxu0 0.0
    %691 = vmatpush1.msra.mxu0 0.0
    %692 = vmatprep.subr.mxu0 0.0
    %693 = vmatpush1.msra.mxu0 0.0
    %694 = vmatprep.subr.mxu0 0.0
    %695 = vmatpush1.msra.mxu0 0.0
    %696 = vmatprep.subr.mxu0 0.0
    %697 = vmatpush1.msra.mxu0 0.0
    %698 = vmatprep.subr.mxu0 0.0
    %699 = vmatpush1.msra.mxu0 0.0
    %700 = vmatprep.subr.mxu0 0.0
    %701 = vmatpush1.msra.mxu0 0.0
    %702 = vmatprep.subr.mxu0 0.0
    %703 = vmatpush1.msra.mxu0 0.0
    %704 = vmatprep.subr.mxu0 0.0
    %705 = vmatpush1.msra.mxu0 0.0
    %706 = vmatprep.subr.mxu0 0.0
    %707 = vmatpush1.msra.mxu0 0.0
    %708 = vmatprep.subr.mxu0 0.0
    %709 = vmatpush1.msra.mxu0 %v670
    %710 = vmatprep.subr.mxu0 0.0
    %711 = vmatpush1.msra.mxu0 %v669
    %712 = vmatprep.subr.mxu0 0.0
    %713 = vmatpush1.msra.mxu0 %v668
    %714 = vmatprep.subr.mxu0 0.0
    %715 = vmatpush1.msra.mxu0 %v667
    %716 = vmatprep.subr.mxu0 0.0
    %717 = vmatpush2.msra.mxu0 0.0
    %718 = vmatprep.subr.mxu0 0.0
    %719 = vmatpush2.msra.mxu0 0.0
    %720 = vmatprep.subr.mxu0 0.0
    %721 = vmatpush2.msra.mxu0 0.0
    %722 = vmatprep.subr.mxu0 0.0
    %723 = vmatpush2.msra.mxu0 0.0
    %724 = vmatprep.subr.mxu0 0.0
    %725 = vmatpush2.msra.mxu0 0.0
    %726 = vmatprep.subr.mxu0 0.0
    %727 = vmatpush2.msra.mxu0 0.0
    %728 = vmatprep.subr.mxu0 0.0
    %729 = vmatpush2.msra.mxu0 0.0
    %730 = vmatprep.subr.mxu0 0.0
    %731 = vmatpush2.msra.mxu0 0.0
    %732 = vmatprep.subr.mxu0 0.0
    %733 = vmatpush2.msra.mxu0 0.0
    %734 = vmatprep.subr.mxu0 0.0
    %735 = vmatpush2.msra.mxu0 0.0
    %736 = vmatprep.subr.mxu0 0.0
    %737 = vmatpush2.msra.mxu0 0.0
    %738 = vmatprep.subr.mxu0 0.0
    %739 = vmatpush2.msra.mxu0 0.0
    %740 = vmatprep.subr.mxu0 0.0
    %741 = vmatpush2.msra.mxu0 0.0
    %742 = vmatprep.subr.mxu0 0.0
    %743 = vmatpush2.msra.mxu0 0.0
    %744 = vmatprep.subr.mxu0 0.0
    %745 = vmatpush2.msra.mxu0 0.0
    %746 = vmatprep.subr.mxu0 0.0
    %747 = vmatpush2.msra.mxu0 0.0
    %748 = vmatprep.mubr.f32.mxu0 0.0
    %749 = vmatmul.mubr.f32.gmra.mxu0 %v679
    %v750 = vpop.f32.mrf.mxu0
    %v751 = vadd.f32 %v676, %v750
    %v752 = vpop.f32.mrf.mxu0
    %753 = vmatprep.mubr.f32.mxu0 0.0
    %754 = vmatmul.mubr.f32.gmra.mxu0 %v682
    %v755 = vpop.f32.mrf.mxu0
    %v756 = vadd.f32 %v676, %v755
    %v757 = vpop.f32.mrf.mxu0
    %758 = vdwg.mxu0
    %vm759 = vcmask 130048
    %760 = vst.msk [vmem:[#allocation2] sm:$0xff] %vm759, %v751
    %761 = vst.msk [vmem:[#allocation2 + $0x8] sm:$0xff] %vm759, %v756
    // Predicated region
    $region54: #{seg_lay_forward.1} parent=1 // pred_check
      _
    $region55: #{seg_lay_forward.1} parent=1 // pred_check_branch
      %763 = sbr.rel (0) target = $region57
    $region56: #{seg_lay_forward.1} parent=1 // pred_region
      %s765 = ssub.s32 256, 256
      %766 = vsyncadd [#allocation3], %s765
      %s767 = sshll.u32 [#allocation2], 4
      %s768 = int_to_ptr.vmem [resolvable:$true] %s767
      %773 = dma.vmem_to_hbm [thread:$0]  %s768, 256, %s13, [#allocation3], 128, 128, 8
    $region57: #{seg_lay_forward.1} parent=1 // pred_fallthru
      _
    // Predicated region
    $region58: #{seg_lay_forward.1} parent=1 // pred_check
      _
    $region59: #{seg_lay_forward.1} parent=1 // pred_check_branch
      %775 = sbr.rel (0) target = $region61
    $region60: #{seg_lay_forward.1} parent=1 // pred_region
      %776 = dma.done [#allocation3], 256
    $region61: #{seg_lay_forward.1} parent=1 // pred_fallthru
      _
    %777 = vsyncpa [#allocation3], 1

</llo_original>
